<compile_context>
chip_gen: v6e
topology: v6e:2x2x1
jax: 0.10.0
libtpu: 0.0.40
codegen_flags: <defaults>
</compile_context>

<pallas_src>
import functools

import jax
import jax.numpy as jnp
from jax import lax
from jax.experimental import pallas as pl
from jax.experimental.pallas import tpu as pltpu


def _cdiv(a, b):
    return (a + b - 1) // b


def _round_up(a, b):
    return _cdiv(a, b) * b


def _ipow(x, n):
    """x**n for static int n >= 1 via exponentiation-by-squaring (VPU only)."""
    assert n >= 1
    result = None
    base = x
    while n:
        if n & 1:
            result = base if result is None else result * base
        n >>= 1
        if n:
            base = base * base
    return result


def _choose_tiles(N, K, itemsize):
    """Pick (TN, TK): lane-aligned K tile; row tile sized to a ~4 MiB block."""
    TK = min(_round_up(K, 128), 2048)
    sub = 16 if itemsize < 4 else 8                  # sublane packing for bf16
    block_budget_bytes = 4 * 1024 * 1024             # per block; Pallas double-buffers
    max_rows = max(sub, (block_budget_bytes // (TK * itemsize)) // sub * sub)
    TN = min(max_rows, _round_up(N, sub))
    # Keep >= 2 steps on the parallel N axis when possible (v7x has 2 TCs).
    if N > sub and _cdiv(N, TN) < 2:
        TN = _round_up(_cdiv(N, 2), sub)
    return TN, TK


def _gem_rows_kernel(x_ref, o_ref, acc_ref, *, p, p_int, half_m, inv_p, eps,
                     total_k, k_tile, ragged_k):
    """Accumulate sum(clamp(x,eps)**p) over K tiles; finalize mean**(1/p).

    x_ref  : (TN, TK)  input tile (ragged tail columns masked in-kernel)
    o_ref  : (TN, 1)   output (written on the last K step)
    acc_ref: (TN, 128) lane-dense f32 running sum
    """
    k = pl.program_id(1)

    @pl.when(k == 0)
    def _init():
        acc_ref[...] = jnp.zeros_like(acc_ref)

    tn, tk = x_ref.shape                             # static block shape
    num_slices = tk // 128

    if ragged_k:
        col = lax.broadcasted_iota(jnp.int32, (1, 128), 1)   # (1,128) lane ids
        base = k * k_tile                                     # dynamic scalar

    # Per-128-lane-slice processing: cast/clamp/pow/mask stay in vregs, never
    # materializing a full (TN, TK) f32 temp. Fold adds are pure VPU.
    part = None
    for j in range(num_slices):
        xs = x_ref[:, j * 128:(j + 1) * 128].astype(jnp.float32)
        xs = jnp.maximum(xs, jnp.float32(eps))
        if p_int is not None:
            xp = _ipow(xs, p_int)                    # VPU multiply chain
        elif half_m is not None:
            r = jnp.sqrt(xs)                         # 1 EUP op
            xp = r if half_m == 0 else _ipow(xs, half_m) * r
        else:
            xp = jnp.exp(jnp.float32(p) * jnp.log(xs))   # 2 EUP ops (fallback)
        if ragged_k:
            valid = (base + (j * 128) + col) < total_k   # (1,128), bcast select
            xp = jnp.where(valid, xp, jnp.float32(0.0))
        part = xp if part is None else part + xp
    acc_ref[...] += part

    @pl.when(k == pl.num_programs(1) - 1)
    def _finalize():
        s = jnp.sum(acc_ref[...], axis=-1, keepdims=True)   # single XLU reduce
        mean = s * jnp.float32(1.0 / total_k)
        mean = jnp.maximum(mean, jnp.float32(eps ** p))     # fp safety guard
        if p_int == 1:
            out = mean
        elif p_int == 2:
            out = jnp.sqrt(mean)
        elif p_int == 4:
            out = jnp.sqrt(jnp.sqrt(mean))
        else:
            out = jnp.exp(jnp.float32(inv_p) * jnp.log(mean))
        o_ref[...] = out.astype(o_ref.dtype)


def _gem_rows(x2d, p, eps):
    """GeM-reduce each row of an (N, K) matrix -> (N, 1). No host-side padding."""
    N, K = x2d.shape
    dtype = x2d.dtype
    itemsize = jnp.dtype(dtype).itemsize
    TN, TK = _choose_tiles(N, K, itemsize)
    grid = (_cdiv(N, TN), _cdiv(K, TK))
    ragged_k = (K % TK) != 0

    p_r = round(p)
    p_int = int(p_r) if (abs(p - p_r) < 1e-12 and p_r >= 1) else None
    half_m = None
    if p_int is None:
        p2 = round(2.0 * p)
        if abs(2.0 * p - p2) < 1e-12 and p2 >= 1 and p2 % 2 == 1:
            half_m = int((p2 - 1) // 2)              # p = half_m + 0.5

    kernel = functools.partial(
        _gem_rows_kernel, p=p, p_int=p_int, half_m=half_m, inv_p=1.0 / p,
        eps=eps, total_k=K, k_tile=TK, ragged_k=ragged_k)

    flops_per = (p_int + 2) if p_int is not None else 5
    transcend = 0 if p_int is not None else (N * K if half_m is not None else 2 * N * K)
    cost = pl.CostEstimate(
        flops=N * K * flops_per,
        transcendentals=transcend,
        bytes_accessed=N * K * itemsize + N * itemsize)

    out = pl.pallas_call(
        kernel,
        out_shape=jax.ShapeDtypeStruct((N, 1), dtype),
        grid_spec=pltpu.PrefetchScalarGridSpec(
            num_scalar_prefetch=0,
            grid=grid,
            in_specs=[pl.BlockSpec((TN, TK), lambda n, k: (n, k))],
            out_specs=pl.BlockSpec((TN, 1), lambda n, k: (n, 0)),
            scratch_shapes=[pltpu.VMEM((TN, 128), jnp.float32)],
        ),
        compiler_params=pltpu.CompilerParams(
            dimension_semantics=("parallel", "arbitrary"),
            vmem_limit_bytes=48 * 1024 * 1024,
        ),
        cost_estimate=cost,
    )(x2d)
    return out


def generalized_mean_pooling(x, norm, output_size, eps=1e-6):
    """GeM pooling matching GeneralizedMeanPooling.forward for NCDHW input.

    x: (B, C, D, H, W); output_size: int or (oD, oH, oW), entries may be None
    (keep input size); must evenly divide (D, H, W). Returns (B, C, oD, oH, oW).
    """
    assert norm > 0
    p = float(norm)
    if isinstance(output_size, int):
        output_size = (output_size, output_size, output_size)
    B, C, D, H, W = x.shape
    oD, oH, oW = (o if o is not None else s
                  for o, s in zip(output_size, (D, H, W)))
    assert D % oD == 0 and H % oH == 0 and W % oW == 0, (
        "only evenly-divisible adaptive pooling supported")
    kD, kH, kW = D // oD, H // oH, W // oW

    if oD == 1 and oH == 1 and oW == 1:
        # Global GeM (common case): windows contiguous -- plain reshape, no copy.
        x2d = x.reshape(B * C, D * H * W)
    else:
        # General divisible case: expose each window as a contiguous row.
        xw = x.reshape(B, C, oD, kD, oH, kH, oW, kW)
        xw = jnp.transpose(xw, (0, 1, 2, 4, 6, 3, 5, 7))
        x2d = xw.reshape(B * C * oD * oH * oW, kD * kH * kW)

    out = _gem_rows(x2d, p, eps)                     # (N, 1) Pallas hot path
    return out.reshape(B, C, oD, oH, oW)


if __name__ == "__main__":
    eps = 1e-6
    k0, k1, k2 = jax.random.split(jax.random.PRNGKey(0), 3)

    def ref_gem(x, p, out_size, eps):
        B, C, D, H, W = x.shape
        if isinstance(out_size, int):
            out_size = (out_size,) * 3
        oD, oH, oW = out_size
        kD, kH, kW = D // oD, H // oH, W // oW
        xf = jnp.maximum(x.astype(jnp.float32), eps) ** p
        xf = xf.reshape(B, C, oD, kD, oH, kH, oW, kW)
        return jnp.mean(xf, axis=(3, 5, 7)) ** (1.0 / p)

    # 1) Global GeM, integer p=3 (VPU multiply-chain fast path), aligned K=512.
    x1 = jax.random.normal(k0, (2, 4, 8, 8, 8), dtype=jnp.float32)
    y1 = jax.block_until_ready(
        generalized_mean_pooling(x1, norm=3.0, output_size=1, eps=eps))
    assert y1.shape == (2, 4, 1, 1, 1)
    assert jnp.allclose(y1.reshape(2, 4), ref_gem(x1, 3.0, 1, eps).reshape(2, 4),
                        rtol=1e-4, atol=1e-5), "mismatch (p=3, global)"

    # 2) Non-global GeM (2x2x2 output), p=2 -> sqrt epilogue; K=64 < 128
    #    exercises the ragged-K lane mask.
    y2 = jax.block_until_ready(
        generalized_mean_pooling(x1, norm=2.0, output_size=2, eps=eps))
    assert y2.shape == (2, 4, 2, 2, 2)
    assert jnp.allclose(y2, ref_gem(x1, 2.0, 2, eps),
                        rtol=1e-4, atol=1e-5), "mismatch (p=2, 2x2x2)"

    # 3) Ragged N (15 rows) and ragged K (210 cols), half-integer p=2.5
    #    (integer-chain * sqrt fast path).
    x3 = jax.random.normal(k1, (3, 5, 7, 6, 5), dtype=jnp.float32)
    y3 = jax.block_until_ready(
        generalized_mean_pooling(x3, norm=2.5, output_size=(1, 1, 1), eps=eps))
    assert y3.shape == (3, 5, 1, 1, 1)
    assert jnp.allclose(y3.reshape(3, 5), ref_gem(x3, 2.5, (1, 1, 1), eps).reshape(3, 5),
                        rtol=1e-4, atol=1e-5), "mismatch (p=2.5, ragged)"

    # 4) bf16 input (16-row sublane packing path), global GeM, p=3.
    x4 = jax.random.normal(k2, (2, 4, 8, 8, 8), dtype=jnp.float32).astype(jnp.bfloat16)
    y4 = jax.block_until_ready(
        generalized_mean_pooling(x4, norm=3.0, output_size=1, eps=eps))
    assert y4.shape == (2, 4, 1, 1, 1)
    assert jnp.allclose(y4.astype(jnp.float32).reshape(2, 4),
                        ref_gem(x4, 3.0, 1, eps).reshape(2, 4),
                        rtol=2e-2, atol=2e-2), "mismatch (p=3, bf16)"

    print("KERNEL_OK")
</pallas_src>

<mosaic_0001>
module attributes {stable_mosaic.version = 11 : i64} {
  func.func @_gem_rows_kernel(%arg0: i32, %arg1: i32, %arg2: memref<8x512xf32, #tpu.memory_space<vmem>>, %arg3: memref<8x1xf32, #tpu.memory_space<vmem>>, %arg4: memref<8x128xf32, #tpu.memory_space<vmem>>) attributes {dimension_semantics = [#tpu.dimension_semantics<parallel>, #tpu.dimension_semantics<arbitrary>], iteration_bounds = array<i64: 1, 1>, scalar_prefetch = 0 : i64, scratch_operands = 1 : i64, tpu.core_type = #tpu.core_type<tc>, window_params = [{transform_indices = @transform_0, window_bounds = array<i64: 8, 512>}, {transform_indices = @transform_1, window_bounds = array<i64: 8, 1>}]} {
    %c0_i32 = arith.constant 0 : i32
    %0 = arith.cmpi eq, %arg1, %c0_i32 : i32
    %1 = arith.extui %0 : i1 to i32
    %c0_i32_0 = arith.constant 0 : i32
    %2 = arith.cmpi ne, %1, %c0_i32_0 : i32
    scf.if %2 {
      %cst_14 = arith.constant 0.000000e+00 : f32
      %32 = vector.broadcast %cst_14 : f32 to vector<8x128xf32>
      %c0_15 = arith.constant 0 : index
      %c0_16 = arith.constant 0 : index
      %33 = vector.load %arg4[%c0_15, %c0_16] : memref<8x128xf32, #tpu.memory_space<vmem>>, vector<8x128xf32>
      tpu.vector_store %arg4[%c0_15, %c0_16], %32 {strides = array<i32>} : memref<8x128xf32, #tpu.memory_space<vmem>>, vector<8x128xf32>,
    } else {
    }
    %c0 = arith.constant 0 : index
    %c0_1 = arith.constant 0 : index
    %3 = vector.load %arg2[%c0, %c0_1] : memref<8x512xf32, #tpu.memory_space<vmem>>, vector<8x128xf32>
    %cst = arith.constant 9.99999997E-7 : f32
    %4 = vector.broadcast %cst : f32 to vector<8x128xf32>
    %5 = arith.maximumf %3, %4 : vector<8x128xf32>
    %6 = arith.mulf %5, %5 : vector<8x128xf32>
    %7 = arith.mulf %5, %6 : vector<8x128xf32>
    %c0_2 = arith.constant 0 : index
    %c128 = arith.constant 128 : index
    %8 = vector.load %arg2[%c0_2, %c128] : memref<8x512xf32, #tpu.memory_space<vmem>>, vector<8x128xf32>
    %cst_3 = arith.constant 9.99999997E-7 : f32
    %9 = vector.broadcast %cst_3 : f32 to vector<8x128xf32>
    %10 = arith.maximumf %8, %9 : vector<8x128xf32>
    %11 = arith.mulf %10, %10 : vector<8x128xf32>
    %12 = arith.mulf %10, %11 : vector<8x128xf32>
    %13 = arith.addf %7, %12 : vector<8x128xf32>
    %c0_4 = arith.constant 0 : index
    %c256 = arith.constant 256 : index
    %14 = vector.load %arg2[%c0_4, %c256] : memref<8x512xf32, #tpu.memory_space<vmem>>, vector<8x128xf32>
    %cst_5 = arith.constant 9.99999997E-7 : f32
    %15 = vector.broadcast %cst_5 : f32 to vector<8x128xf32>
    %16 = arith.maximumf %14, %15 : vector<8x128xf32>
    %17 = arith.mulf %16, %16 : vector<8x128xf32>
    %18 = arith.mulf %16, %17 : vector<8x128xf32>
    %19 = arith.addf %13, %18 : vector<8x128xf32>
    %c0_6 = arith.constant 0 : index
    %c384 = arith.constant 384 : index
    %20 = vector.load %arg2[%c0_6, %c384] : memref<8x512xf32, #tpu.memory_space<vmem>>, vector<8x128xf32>
    %cst_7 = arith.constant 9.99999997E-7 : f32
    %21 = vector.broadcast %cst_7 : f32 to vector<8x128xf32>
    %22 = arith.maximumf %20, %21 : vector<8x128xf32>
    %23 = arith.mulf %22, %22 : vector<8x128xf32>
    %24 = arith.mulf %22, %23 : vector<8x128xf32>
    %25 = arith.addf %19, %24 : vector<8x128xf32>
    %c0_8 = arith.constant 0 : index
    %c0_9 = arith.constant 0 : index
    %26 = vector.load %arg4[%c0_8, %c0_9] : memref<8x128xf32, #tpu.memory_space<vmem>>, vector<8x128xf32>
    %27 = arith.addf %26, %25 : vector<8x128xf32>
    %c0_10 = arith.constant 0 : index
    %c0_11 = arith.constant 0 : index
    %28 = vector.load %arg4[%c0_10, %c0_11] : memref<8x128xf32, #tpu.memory_space<vmem>>, vector<8x128xf32>
    tpu.vector_store %arg4[%c0_10, %c0_11], %27 {strides = array<i32>} : memref<8x128xf32, #tpu.memory_space<vmem>>, vector<8x128xf32>,
    %c0_i32_12 = arith.constant 0 : i32
    %29 = arith.cmpi eq, %arg1, %c0_i32_12 : i32
    %30 = arith.extui %29 : i1 to i32
    %c0_i32_13 = arith.constant 0 : i32
    %31 = arith.cmpi ne, %30, %c0_i32_13 : i32
    scf.if %31 {
      %c0_14 = arith.constant 0 : index
      %c0_15 = arith.constant 0 : index
      %32 = vector.load %arg4[%c0_14, %c0_15] : memref<8x128xf32, #tpu.memory_space<vmem>>, vector<8x128xf32>
      %cst_16 = arith.constant dense<0.000000e+00> : vector<8xf32>
      %33 = vector.multi_reduction <add>, %32, %cst_16 [1] : vector<8x128xf32> to vector<8xf32>
      %34 = vector.shape_cast %33 : vector<8xf32> to vector<8x1xf32>
      %cst_17 = arith.constant 0.001953125 : f32
      %35 = vector.broadcast %cst_17 : f32 to vector<8x1xf32>
      %36 = arith.mulf %34, %35 : vector<8x1xf32>
      %cst_18 = arith.constant 1.000000e-18 : f32
      %37 = vector.broadcast %cst_18 : f32 to vector<8x1xf32>
      %38 = arith.maximumf %36, %37 : vector<8x1xf32>
      %39 = math.log %38 : vector<8x1xf32>
      %cst_19 = arith.constant 0.333333343 : f32
      %40 = vector.broadcast %cst_19 : f32 to vector<8x1xf32>
      %41 = arith.mulf %40, %39 : vector<8x1xf32>
      %42 = math.exp %41 : vector<8x1xf32>
      %c0_20 = arith.constant 0 : index
      %c0_21 = arith.constant 0 : index
      %43 = vector.load %arg3[%c0_20, %c0_21] : memref<8x1xf32, #tpu.memory_space<vmem>>, vector<8x1xf32>
      tpu.vector_store %arg3[%c0_20, %c0_21], %42 {strides = array<i32>} : memref<8x1xf32, #tpu.memory_space<vmem>>, vector<8x1xf32>,
    } else {
    }
    return
  }
  func.func @transform_0(%arg0: i32, %arg1: i32) -> (i32, i32) {
    %c0_i32 = arith.constant 0 : i32
    return %arg0, %arg1 : i32, i32
  }
  func.func @transform_1(%arg0: i32, %arg1: i32) -> (i32, i32) {
    %c0_i32 = arith.constant 0 : i32
    %c0_i32_0 = arith.constant 0 : i32
    return %arg0, %c0_i32 : i32, i32
  }
}

</mosaic_0001>

<llo_original>
// kernel: tpu_custom_call.1
$region0: #{tpu_custom_call.1}
  #allocation0 [shape = 'u32[]', space=smem, size = 0x4, offset = 0x4, fixed_abs, tag = 'smem constant byte address 0x4 - core index']
  #allocation1 [shape = 'u32[144,128]{1,0:T(1,128)}', space=vmem, size = 0x12000, scoped, tag = 'internal scratch']
  #allocation2 [shape = 'f32[8,128]{1,0:T(8,128)}', space=vmem, size = 0x1000, scoped, tag = 'scratch operand']
  %s0 = inlined_call_operand.hbm [shape: f32[8,512], index: 0, kind: input, shape index: {}]
  %s1 = inlined_call_operand.vmem [shape: f32[8,1], index: 1, kind: output, shape index: {}]
  %s2 = sld [smem:[#allocation0]]
  $region26: #{tpu_custom_call.1} parent=0
    _
  %s4 = ssub.s32 1, %s2
  %s5 = scalar_select 0, %s4, %s2
  $region1: #{tpu_custom_call.1} parent=0
    #allocation3 [shape = 'u8[16384]{0}', space=vmem, size = 0x4000, scoped, tag = 'input window, operand 0, single buffered']
    #allocation4 [shape = 's32[1]{0}', space=sflag, size = 0x4, scoped, tag = 'scoped memory for tpu_custom_call.1']
    %6 = vsyncpa [#allocation4], 0
    // Predicated region
    $region2: #{tpu_custom_call.1} parent=1 // pred_check
      _
    $region3: #{tpu_custom_call.1} parent=1 // pred_check_branch
      %8 = sbr.rel (0) target = $region5
    $region4: #{tpu_custom_call.1} parent=1 // pred_region
      %s10 = ssub.s32 512, 512
      %11 = vsyncadd [#allocation4], %s10
      %s13 = sshll.u32 [#allocation3], 4
      %s14 = int_to_ptr.vmem [resolvable:$true] %s13
      %16 = dma.hbm_to_vmem [thread:$0]  %s0, 512, %s14, [#allocation4]
    $region5: #{tpu_custom_call.1} parent=1 // pred_fallthru
      _
    // Predicated region
    $region6: #{tpu_custom_call.1} parent=1 // pred_check
      _
    $region7: #{tpu_custom_call.1} parent=1 // pred_check_branch
      %18 = sbr.rel (0) target = $region9
    $region8: #{tpu_custom_call.1} parent=1 // pred_region
      %19 = dma.done [#allocation4], 512
    $region9: #{tpu_custom_call.1} parent=1 // pred_fallthru
      _
    %p20 = scmp.eq.s32.totalorder 0, 0
    // Predicated region
    $region10: #{tpu_custom_call.1} parent=1 // pred_check
      %p21 = pneg %p20
    $region11: #{tpu_custom_call.1} parent=1 // pred_check_branch
      %23 = sbr.rel (%p21) target = $region13
    $region12: #{tpu_custom_call.1} parent=1 // pred_region
      %24 = vst [vmem:[#allocation2] sm:$0xff] 0.0
    $region13: #{tpu_custom_call.1} parent=1 // pred_fallthru
      _
    %v25 = vld [vmem:[#allocation3] sm:$0xff]
    %v26 = vmax.f32 %v25, 1e-06
    %v27 = vmul.f32 %v26, %v26
    %v28 = vmul.f32 %v26, %v27
    %v29 = vld [vmem:[#allocation3 + $0x8] sm:$0xff]
    %v30 = vmax.f32 %v29, 1e-06
    %v31 = vmul.f32 %v30, %v30
    %v32 = vmul.f32 %v30, %v31
    %v33 = vadd.f32 %v28, %v32
    %v34 = vld [vmem:[#allocation3 + $0x10] sm:$0xff]
    %v35 = vmax.f32 %v34, 1e-06
    %v36 = vmul.f32 %v35, %v35
    %v37 = vmul.f32 %v35, %v36
    %v38 = vadd.f32 %v33, %v37
    %v39 = vld [vmem:[#allocation3 + $0x18] sm:$0xff]
    %v40 = vmax.f32 %v39, 1e-06
    %v41 = vmul.f32 %v40, %v40
    %v42 = vmul.f32 %v40, %v41
    %v43 = vadd.f32 %v38, %v42
    %v44 = vld [vmem:[#allocation2] sm:$0xff]
    %v45 = vadd.f32 %v44, %v43
    %46 = vst [vmem:[#allocation2] sm:$0xff] %v45
    // Predicated region
    $region14: #{tpu_custom_call.1} parent=1 // pred_check
      %p47 = pneg %p20
    $region15: #{tpu_custom_call.1} parent=1 // pred_check_branch
      %49 = sbr.rel (%p47) target = $region17
    $region16: #{tpu_custom_call.1} parent=1 // pred_region
      %v50 = vld [vmem:[#allocation2] sm:$0xff]
      %51 = vadd.xlane.f32.xlu0 %v50
      %v52 = vpop.xlane.xlu0 %51
      %v53 = vmul.f32 %v52, 0.001953125
      %v54 = vmax.f32 %v53, 1e-18
      %v55 = vlog2.pop %v54
      %v56 = vmul.f32 %v55, 0.6931472
      %v57 = vmul.f32 %v56, 0.33333334
      %v58 = vmul.f32 %v57, 1.442695
      %v59 = vpow.pop %v58
      %vm60 = vcmask 7168
      %61 = vst.msk [vmem:[%s1] sm:$0xff] %vm60, %v59
    $region17: #{tpu_custom_call.1} parent=1 // pred_fallthru
      _
    // Predicated region
    $region18: #{tpu_custom_call.1} parent=1 // pred_check
      _
    $region19: #{tpu_custom_call.1} parent=1 // pred_check_branch
      %63 = sbr.rel (0) target = $region21
    $region20: #{tpu_custom_call.1} parent=1 // pred_region
      _
    $region21: #{tpu_custom_call.1} parent=1 // pred_fallthru
      _
    // Predicated region
    $region22: #{tpu_custom_call.1} parent=1 // pred_check
      _
    $region23: #{tpu_custom_call.1} parent=1 // pred_check_branch
      %65 = sbr.rel (0) target = $region25
    $region24: #{tpu_custom_call.1} parent=1 // pred_region
      _
    $region25: #{tpu_custom_call.1} parent=1 // pred_fallthru
      _
    %66 = vsyncpa [#allocation4], 1

</llo_original>
